<compile_context>
chip_gen: v5e
topology: v5e:2x2
jax: 0.10.0
libtpu: 0.0.40
codegen_flags: <defaults>
</compile_context>

<pallas_src>
import math

import jax
import jax.numpy as jnp
from jax.experimental import pallas as pl
from jax.experimental.pallas import tpu as pltpu

_EPS = 1e-8


def _cosine_kernel(x_ref, y_ref, o_ref):
    # x_ref, y_ref: (tile_m, D) tiles in VMEM; o_ref: (tile_m, 1)
    x = x_ref[...].astype(jnp.float32)
    y = y_ref[...].astype(jnp.float32)

    dot = jnp.sum(x * y, axis=-1, keepdims=True)            # (tile_m, 1)
    nx = jnp.sqrt(jnp.sum(x * x, axis=-1, keepdims=True))   # (tile_m, 1)
    ny = jnp.sqrt(jnp.sum(y * y, axis=-1, keepdims=True))   # (tile_m, 1)

    denom = jnp.maximum(nx, _EPS) * jnp.maximum(ny, _EPS)
    # Exact divide (not approx EUP reciprocal) to keep 1e-5-level accuracy vs reference.
    o_ref[...] = (dot / denom).astype(o_ref.dtype)


def _round_up(x, m):
    return ((x + m - 1) // m) * m


def _choose_tile_m(M, D, in_itemsize):
    """Row tile sized for HBM-roofline DMA while staying VMEM-safe on every TPU gen."""
    target_block_bytes = 4 << 20      # ~4 MiB per input block
    max_footprint_bytes = 40 << 20    # 2 inputs * 2 pipeline buffers; v7x (64 MiB) safe

    m_ceil = max(_round_up(M, 8), 8)

    # Aim each (tile_m, D) input block at ~4 MiB, clamped to the 256-2048 sweet spot.
    tile_m = target_block_bytes // max(D * in_itemsize, 1)
    tile_m = max(8, min(tile_m, 2048))

    # Cap so the double-buffered footprint fits comfortably in VMEM.
    by_vmem = max_footprint_bytes // max(4 * D * in_itemsize, 1)
    tile_m = min(tile_m, max(by_vmem, 8))

    # Never bigger than the (rounded-up) row count.
    tile_m = min(tile_m, m_ceil)

    # Prefer >= 2 grid steps: enables pipeline overlap and megacore sharding (v7x).
    if m_ceil > 8:
        tile_m = min(tile_m, _round_up(pl.cdiv(m_ceil, 2), 8))

    return max(8, (tile_m // 8) * 8)


def cosine_similarity(z_src, z_dst, *, tile_m: int | None = None):
    """Cosine similarity along the last axis, flattened to 1D (PyTorch semantics)."""
    assert z_src.shape == z_dst.shape, "broadcasting of differing shapes not needed here"
    D = z_src.shape[-1]
    M = int(math.prod(z_src.shape[:-1])) if z_src.ndim > 1 else 1

    x = z_src.reshape(M, D)
    y = z_dst.reshape(M, D)

    in_itemsize = jnp.dtype(z_src.dtype).itemsize
    out_itemsize = in_itemsize
    if tile_m is None:
        tile_m = _choose_tile_m(M, D, in_itemsize)

    grid = (pl.cdiv(M, tile_m),)

    # Explicit scoped-VMEM budget (defaults of 16/32 MiB would otherwise cap large tiles).
    footprint = 4 * tile_m * D * in_itemsize + 4 * tile_m * out_itemsize
    vmem_limit = int(min(64 << 20, max(32 << 20, footprint + (8 << 20))))

    cost = pl.CostEstimate(
        flops=6 * M * D,
        transcendentals=2 * M,
        bytes_accessed=2 * M * D * in_itemsize + M * out_itemsize,
    )

    out = pl.pallas_call(
        _cosine_kernel,
        out_shape=jax.ShapeDtypeStruct((M, 1), z_src.dtype),
        grid_spec=pltpu.PrefetchScalarGridSpec(
            num_scalar_prefetch=0,
            grid=grid,
            in_specs=[
                pl.BlockSpec((tile_m, D), lambda i: (i, 0)),
                pl.BlockSpec((tile_m, D), lambda i: (i, 0)),
            ],
            out_specs=pl.BlockSpec((tile_m, 1), lambda i: (i, 0)),
        ),
        compiler_params=pltpu.CompilerParams(
            dimension_semantics=("parallel",),
            vmem_limit_bytes=vmem_limit,
        ),
        cost_estimate=cost,
    )(x, y)

    return out[:, 0]  # reshape(-1) semantics: 1D of length M


def _reference(z_src, z_dst):
    x = z_src.astype(jnp.float32)
    y = z_dst.astype(jnp.float32)
    dot = jnp.sum(x * y, axis=-1)
    nx = jnp.sqrt(jnp.sum(x * x, axis=-1))
    ny = jnp.sqrt(jnp.sum(y * y, axis=-1))
    return (dot / (jnp.maximum(nx, _EPS) * jnp.maximum(ny, _EPS))).reshape(-1)


if __name__ == "__main__":
    key = jax.random.PRNGKey(0)
    k1, k2 = jax.random.split(key)

    # Small embedding batch: (batch=2, seq=8, hidden=32)
    z_src = jax.random.normal(k1, (2, 8, 32), dtype=jnp.float32)
    z_dst = jax.random.normal(k2, (2, 8, 32), dtype=jnp.float32)

    out = jax.block_until_ready(cosine_similarity(z_src, z_dst))
    ref = _reference(z_src, z_dst)
    assert out.shape == (2 * 8,), out.shape
    assert jnp.allclose(out, ref, atol=1e-5, rtol=1e-5), (out, ref)

    # Ragged row count (M=21, not a multiple of tile_m) exercises the unpadded
    # cdiv grid with a masked partial last block.
    k3, k4 = jax.random.split(k2)
    a = jax.random.normal(k3, (3, 7, 32), dtype=jnp.float32)
    b = jax.random.normal(k4, (3, 7, 32), dtype=jnp.float32)
    out2 = jax.block_until_ready(cosine_similarity(a, b))
    assert out2.shape == (21,), out2.shape
    assert jnp.allclose(out2, _reference(a, b), atol=1e-5, rtol=1e-5)

    print("KERNEL_OK")
</pallas_src>

<mosaic_0001>
module attributes {stable_mosaic.version = 11 : i64} {
  func.func @_cosine_kernel(%arg0: i32, %arg1: memref<8x32xf32, #tpu.memory_space<vmem>>, %arg2: memref<8x32xf32, #tpu.memory_space<vmem>>, %arg3: memref<8x1xf32, #tpu.memory_space<vmem>>) attributes {dimension_semantics = [#tpu.dimension_semantics<parallel>], iteration_bounds = array<i64: 2>, scalar_prefetch = 0 : i64, scratch_operands = 0 : i64, tpu.core_type = #tpu.core_type<tc>, window_params = [{transform_indices = @transform_0, window_bounds = array<i64: 8, 32>}, {transform_indices = @transform_1, window_bounds = array<i64: 8, 32>}, {transform_indices = @transform_2, window_bounds = array<i64: 8, 1>}]} {
    %c0 = arith.constant 0 : index
    %c0_0 = arith.constant 0 : index
    %0 = vector.load %arg1[%c0, %c0_0] : memref<8x32xf32, #tpu.memory_space<vmem>>, vector<8x32xf32>
    %c0_1 = arith.constant 0 : index
    %c0_2 = arith.constant 0 : index
    %1 = vector.load %arg2[%c0_1, %c0_2] : memref<8x32xf32, #tpu.memory_space<vmem>>, vector<8x32xf32>
    %2 = arith.mulf %0, %1 : vector<8x32xf32>
    %cst = arith.constant dense<0.000000e+00> : vector<8xf32>
    %3 = vector.multi_reduction <add>, %2, %cst [1] : vector<8x32xf32> to vector<8xf32>
    %4 = vector.shape_cast %3 : vector<8xf32> to vector<8x1xf32>
    %5 = arith.mulf %0, %0 : vector<8x32xf32>
    %cst_3 = arith.constant dense<0.000000e+00> : vector<8xf32>
    %6 = vector.multi_reduction <add>, %5, %cst_3 [1] : vector<8x32xf32> to vector<8xf32>
    %7 = vector.shape_cast %6 : vector<8xf32> to vector<8x1xf32>
    %8 = math.sqrt %7 : vector<8x1xf32>
    %9 = arith.mulf %1, %1 : vector<8x32xf32>
    %cst_4 = arith.constant dense<0.000000e+00> : vector<8xf32>
    %10 = vector.multi_reduction <add>, %9, %cst_4 [1] : vector<8x32xf32> to vector<8xf32>
    %11 = vector.shape_cast %10 : vector<8xf32> to vector<8x1xf32>
    %12 = math.sqrt %11 : vector<8x1xf32>
    %cst_5 = arith.constant 9.99999993E-9 : f32
    %13 = vector.broadcast %cst_5 : f32 to vector<8x1xf32>
    %14 = arith.maximumf %8, %13 : vector<8x1xf32>
    %cst_6 = arith.constant 9.99999993E-9 : f32
    %15 = vector.broadcast %cst_6 : f32 to vector<8x1xf32>
    %16 = arith.maximumf %12, %15 : vector<8x1xf32>
    %17 = arith.mulf %14, %16 : vector<8x1xf32>
    %18 = arith.divf %4, %17 : vector<8x1xf32>
    %c0_7 = arith.constant 0 : index
    %c0_8 = arith.constant 0 : index
    %19 = vector.load %arg3[%c0_7, %c0_8] : memref<8x1xf32, #tpu.memory_space<vmem>>, vector<8x1xf32>
    tpu.vector_store %arg3[%c0_7, %c0_8], %18 {strides = array<i32>} : memref<8x1xf32, #tpu.memory_space<vmem>>, vector<8x1xf32>,
    return
  }
  func.func @transform_0(%arg0: i32) -> (i32, i32) {
    %c0_i32 = arith.constant 0 : i32
    %c0_i32_0 = arith.constant 0 : i32
    return %arg0, %c0_i32 : i32, i32
  }
  func.func @transform_1(%arg0: i32) -> (i32, i32) {
    %c0_i32 = arith.constant 0 : i32
    %c0_i32_0 = arith.constant 0 : i32
    return %arg0, %c0_i32 : i32, i32
  }
  func.func @transform_2(%arg0: i32) -> (i32, i32) {
    %c0_i32 = arith.constant 0 : i32
    %c0_i32_0 = arith.constant 0 : i32
    return %arg0, %c0_i32 : i32, i32
  }
}

</mosaic_0001>

<llo_original>
// kernel: tpu_custom_call.1
$region0: #{tpu_custom_call.1}
  #allocation0 [shape = 'u32[]', space=smem, size = 0x4, offset = 0x4, fixed_abs, tag = 'smem constant byte address 0x4 - core index']
  #allocation1 [shape = 'u32[72,128]{1,0:T(1,128)}', space=vmem, size = 0x9000, scoped, tag = 'internal scratch']
  %s0 = inlined_call_operand.hbm [shape: f32[16,32], index: 0, kind: input, shape index: {}]
  %s1 = inlined_call_operand.hbm [shape: f32[16,32], index: 1, kind: input, shape index: {}]
  %s2 = inlined_call_operand.vmem [shape: f32[16,1], index: 2, kind: output, shape index: {}]
  %s3 = sld [smem:[#allocation0]]
  $region49: #{tpu_custom_call.1} parent=0
    _
  %s5 = ssub.s32 1, %s3
  %s6 = scalar_select 0, %s5, %s3
  $region1: #{tpu_custom_call.1} parent=0
    #allocation2 [shape = 'u8[8192]{0}', space=vmem, size = 0x2000, scoped, tag = 'input window, operand 0']
    #allocation3 [shape = 's32[2]{0}', space=sflag, size = 0x8, scoped, tag = 'scoped memory for tpu_custom_call.1']
    #allocation4 [shape = 'u8[8192]{0}', space=vmem, size = 0x2000, scoped, tag = 'input window, operand 1']
    #allocation5 [shape = 's32[2]{0}', space=sflag, size = 0x8, scoped, tag = 'scoped memory for tpu_custom_call.1']
    %7 = vsyncpa [#allocation3], 0
    %s8 = scalar_lea.sflag [#allocation3], 1
    %9 = vsyncpa %s8, 0
    %10 = vsyncpa [#allocation5], 0
    %s11 = scalar_lea.sflag [#allocation5], 1
    %12 = vsyncpa %s11, 0
    loop: start=0, step=1, limit=4
    $region2: #{tpu_custom_call.1} parent=1 // loop_pre_header
      _
    $region3: #{tpu_custom_call.1} parent=1 // loop_header
      %s14 = sphi 0, %s18
      %p15 = scmp.ge.s32.totalorder %s14, 4
      %s24 = sphi 0, %s26
      %s27 = sphi 0, %s24
      %s28 = sphi 0, %s27
      %s44 = sphi 0, %s28
      %s50 = sphi 0, %s52
      %s53 = sphi 0, %s50
      %s54 = sphi 0, %s53
      %s70 = sphi 0, %s54
      %s76 = sphi 0, %s78
      %s79 = sphi 0, %s76
      %s80 = sphi 0, %s79
      %s96 = sphi 0, %s80
    $region4: #{tpu_custom_call.1} parent=1 // loop_header_branch
      %17 = sbr.rel (%p15) target = $region8
    $region5: #{tpu_custom_call.1} parent=1 // loop_body
      %s19 = ssub.s32 %s14, 1
      %s20 = ssub.s32 %s14, 2
      %s21 = sadd.s32 %s14, 1
      %s22 = ssub.s32 %s14, %s21
      %p23 = scmp.eq.s32.totalorder %s22, 0
      %s25 = sadd.s32 %s24, 1
      %s26 = scalar_select %p23, %s24, %s25
      %p29 = pneg %p23
      %p30 = scmp.eq.s32.totalorder %s14, 1
      %p31 = por %p29, %p30
      %p32 = scmp.ne.s32.totalorder %s24, %s27
      %p33 = scmp.eq.s32.totalorder %s14, 0
      %p34 = por %p32, %p33
      %p35 = scmp.ne.s32.totalorder %s24, %s27
      %p36 = scmp.eq.s32.totalorder %s19, 1
      %p37 = por %p35, %p36
      %p38 = scmp.ne.s32.totalorder %s27, %s28
      %p39 = scmp.eq.s32.totalorder %s19, 0
      %p40 = por %p38, %p39
      %p41 = scmp.ne.s32.totalorder %s27, %s28
      %p42 = scmp.eq.s32.totalorder %s20, 1
      %p43 = por %p41, %p42
      %p45 = scmp.ne.s32.totalorder %s28, %s44
      %p46 = scmp.eq.s32.totalorder %s20, 0
      %p47 = por %p45, %p46
      %s48 = ssub.s32 %s14, %s21
      %p49 = scmp.eq.s32.totalorder %s48, 0
      %s51 = sadd.s32 %s50, 1
      %s52 = scalar_select %p49, %s50, %s51
      %p55 = pneg %p49
      %p56 = scmp.eq.s32.totalorder %s14, 1
      %p57 = por %p55, %p56
      %p58 = scmp.ne.s32.totalorder %s50, %s53
      %p59 = scmp.eq.s32.totalorder %s14, 0
      %p60 = por %p58, %p59
      %p61 = scmp.ne.s32.totalorder %s50, %s53
      %p62 = scmp.eq.s32.totalorder %s19, 1
      %p63 = por %p61, %p62
      %p64 = scmp.ne.s32.totalorder %s53, %s54
      %p65 = scmp.eq.s32.totalorder %s19, 0
      %p66 = por %p64, %p65
      %p67 = scmp.ne.s32.totalorder %s53, %s54
      %p68 = scmp.eq.s32.totalorder %s20, 1
      %p69 = por %p67, %p68
      %p71 = scmp.ne.s32.totalorder %s54, %s70
      %p72 = scmp.eq.s32.totalorder %s20, 0
      %p73 = por %p71, %p72
      %s74 = ssub.s32 %s14, %s21
      %p75 = scmp.eq.s32.totalorder %s74, 0
      %s77 = sadd.s32 %s76, 1
      %s78 = scalar_select %p75, %s76, %s77
      %p81 = pneg %p75
      %p82 = scmp.eq.s32.totalorder %s14, 1
      %p83 = por %p81, %p82
      %p84 = scmp.ne.s32.totalorder %s76, %s79
      %p85 = scmp.eq.s32.totalorder %s14, 0
      %p86 = por %p84, %p85
      %p87 = scmp.ne.s32.totalorder %s76, %s79
      %p88 = scmp.eq.s32.totalorder %s19, 1
      %p89 = por %p87, %p88
      %p90 = scmp.ne.s32.totalorder %s79, %s80
      %p91 = scmp.eq.s32.totalorder %s19, 0
      %p92 = por %p90, %p91
      %p93 = scmp.ne.s32.totalorder %s79, %s80
      %p94 = scmp.eq.s32.totalorder %s20, 1
      %p95 = por %p93, %p94
      %p97 = scmp.ne.s32.totalorder %s80, %s96
      %p98 = scmp.eq.s32.totalorder %s20, 0
      %p99 = por %p97, %p98
      %p100 = scmp.le.s32.totalorder 1, %s14
      %p101 = scmp.lt.s32.totalorder %s14, 3
      %p102 = pnand %p100, %p101
      %p103 = pneg %p102
      // Predicated region
      $region9: #{tpu_custom_call.1} parent=5 // pred_check
        _
      $region10: #{tpu_custom_call.1} parent=5 // pred_check_branch
        %105 = sbr.rel (%p102) target = $region12
      $region11: #{tpu_custom_call.1} parent=5 // pred_region
        %s106 = ssub.s32 %s14, 1
      $region12: #{tpu_custom_call.1} parent=5 // pred_fallthru
        _
      %p107 = scmp.lt.s32.totalorder %s14, 2
      // Predicated region
      $region13: #{tpu_custom_call.1} parent=5 // pred_check
        %p108 = pneg %p107
      $region14: #{tpu_custom_call.1} parent=5 // pred_check_branch
        %110 = sbr.rel (%p108) target = $region16
      $region15: #{tpu_custom_call.1} parent=5 // pred_region
        // Predicated region
        $region17: #{tpu_custom_call.1} parent=15 // pred_check
          %p111 = pneg %p34
        $region18: #{tpu_custom_call.1} parent=15 // pred_check_branch
          %113 = sbr.rel (%p111) target = $region20
        $region19: #{tpu_custom_call.1} parent=15 // pred_region
          %s114 = sand.u32 %s24, 1
          %s115 = scalar_lea.sflag [#allocation3], %s114
          %s116 = sand.u32 %s24, 1
          %s117 = smul.addr %s116, 8
          %s118 = scalar_lea.vmem [#allocation2], %s117
          %120 = vsyncadd %s115, 0
          %s121 = smul.addr %s14, 8
          %s122 = scalar_lea.hbm %s0, %s121
          %s124 = sshll.u32 %s122, 4
          %s125 = int_to_ptr.hbm [resolvable:$true] %s124
          %s126 = sshll.u32 %s118, 4
          %s127 = int_to_ptr.vmem [resolvable:$true] %s126
          %129 = dma.hbm_to_vmem [thread:$0]  %s125, 128, %s127, %s115
        $region20: #{tpu_custom_call.1} parent=15 // pred_fallthru
          _
        // Predicated region
        $region21: #{tpu_custom_call.1} parent=15 // pred_check
          %p130 = pneg %p60
        $region22: #{tpu_custom_call.1} parent=15 // pred_check_branch
          %132 = sbr.rel (%p130) target = $region24
        $region23: #{tpu_custom_call.1} parent=15 // pred_region
          %s133 = sand.u32 %s50, 1
          %s134 = scalar_lea.sflag [#allocation5], %s133
          %s135 = sand.u32 %s50, 1
          %s136 = smul.addr %s135, 8
          %s137 = scalar_lea.vmem [#allocation4], %s136
          %139 = vsyncadd %s134, 0
          %s140 = smul.addr %s14, 8
          %s141 = scalar_lea.hbm %s1, %s140
          %s143 = sshll.u32 %s141, 4
          %s144 = int_to_ptr.hbm [resolvable:$true] %s143
          %s145 = sshll.u32 %s137, 4
          %s146 = int_to_ptr.vmem [resolvable:$true] %s145
          %148 = dma.hbm_to_vmem [thread:$0]  %s144, 128, %s146, %s134
        $region24: #{tpu_custom_call.1} parent=15 // pred_fallthru
          _
      $region16: #{tpu_custom_call.1} parent=5 // pred_fallthru
        _
      %p149 = scmp.le.s32.totalorder 1, %s14
      %p150 = scmp.lt.s32.totalorder %s14, 3
      %p151 = pnand %p149, %p150
      %p152 = pneg %p151
      // Predicated region
      $region25: #{tpu_custom_call.1} parent=5 // pred_check
        _
      $region26: #{tpu_custom_call.1} parent=5 // pred_check_branch
        %154 = sbr.rel (%p151) target = $region28
      $region27: #{tpu_custom_call.1} parent=5 // pred_region
        %s155 = ssub.s32 %s14, 1
        %s156 = sand.u32 %s27, 1
        %s157 = scalar_lea.sflag [#allocation3], %s156
        %s158 = sand.u32 %s27, 1
        %s159 = smul.addr %s158, 8
        %s160 = scalar_lea.vmem [#allocation2], %s159
        // Predicated region
        $region29: #{tpu_custom_call.1} parent=27 // pred_check
          %p161 = pneg %p40
        $region30: #{tpu_custom_call.1} parent=27 // pred_check_branch
          %163 = sbr.rel (%p161) target = $region32
        $region31: #{tpu_custom_call.1} parent=27 // pred_region
          %165 = dma.done %s157, 128
        $region32: #{tpu_custom_call.1} parent=27 // pred_fallthru
          _
        %s166 = sand.u32 %s53, 1
        %s167 = scalar_lea.sflag [#allocation5], %s166
        %s168 = sand.u32 %s53, 1
        %s169 = smul.addr %s168, 8
        %s170 = scalar_lea.vmem [#allocation4], %s169
        // Predicated region
        $region33: #{tpu_custom_call.1} parent=27 // pred_check
          %p171 = pneg %p66
        $region34: #{tpu_custom_call.1} parent=27 // pred_check_branch
          %173 = sbr.rel (%p171) target = $region36
        $region35: #{tpu_custom_call.1} parent=27 // pred_region
          %175 = dma.done %s167, 128
        $region36: #{tpu_custom_call.1} parent=27 // pred_fallthru
          _
        %s176 = sand.u32 %s27, 1
        %s177 = scalar_lea.sflag [#allocation3], %s176
        %s178 = sand.u32 %s27, 1
        %s179 = smul.addr %s178, 8
        %s180 = scalar_lea.vmem [#allocation2], %s179
        %p181 = pneg %p40
        %p182 = pneg %p37
        %s183 = sand.u32 %s53, 1
        %s184 = scalar_lea.sflag [#allocation5], %s183
        %s185 = sand.u32 %s53, 1
        %s186 = smul.addr %s185, 8
        %s187 = scalar_lea.vmem [#allocation4], %s186
        %p188 = pneg %p66
        %p189 = pneg %p63
        %p190 = pneg %p92
        %p191 = pneg %p89
        %p192 = scmp.lt.s32.totalorder %s19, 1
        %s193 = scalar_select %p192, %s19, 1
        %s194 = smul.addr %s193, 8
        %s195 = scalar_lea.vmem %s2, %s194
        %p196 = scmp.lt.s32.totalorder %s19, 1
        %s197 = scalar_select %p196, %s19, 1
        %s198 = smul.addr %s197, 8
        %s199 = scalar_lea.vmem %s2, %s198
        %v200 = vld [vmem:[%s160] sm:$0xff]
        %v201 = vld [vmem:[%s170] sm:$0xff]
        %v202 = vmul.f32 %v200, %v201
        %vm203 = vcmask 261120
        %v204 = vsel %vm203, %v202, 0.0
        %205 = vadd.xlane.f32.xlu0 %v204
        %v206 = vpop.xlane.xlu0 %205
        %v207 = vmul.f32 %v200, %v200
        %v208 = vsel %vm203, %v207, 0.0
        %209 = vadd.xlane.f32.xlu0 %v208
        %v210 = vpop.xlane.xlu0 %209
        %v211 = vrsqrt.pop %v210
        %v212 = vmul.f32 %v211, %v210
        %v213 = vmul.f32 %v212, %v211
        %v214 = vmul.f32 0.5, %v213
        %v215 = vsub.f32 1.5, %v214
        %v216 = vmul.f32 %v211, %v215
        %v217 = vmul.f32 %v210, %v216
        %vm218 = vcmp.eq.f32.partialorder %v210, inf
        %v219 = vsel %vm218, %v210, %v217
        %vm220 = vcmp.eq.f32.partialorder %v210, 0.0
        %v221 = vand.u32 %v210, 2147483648
        %v222 = vsel %vm220, %v221, %v219
        %v223 = vmul.f32 %v201, %v201
        %v224 = vsel %vm203, %v223, 0.0
        %225 = vadd.xlane.f32.xlu0 %v224
        %v226 = vpop.xlane.xlu0 %225
        %v227 = vrsqrt.pop %v226
        %v228 = vmul.f32 %v227, %v226
        %v229 = vmul.f32 %v228, %v227
        %v230 = vmul.f32 0.5, %v229
        %v231 = vsub.f32 1.5, %v230
        %v232 = vmul.f32 %v227, %v231
        %v233 = vmul.f32 %v226, %v232
        %vm234 = vcmp.eq.f32.partialorder %v226, inf
        %v235 = vsel %vm234, %v226, %v233
        %vm236 = vcmp.eq.f32.partialorder %v226, 0.0
        %v237 = vand.u32 %v226, 2147483648
        %v238 = vsel %vm236, %v237, %v235
        %v239 = vmax.f32 %v222, 1e-08
        %v240 = vmax.f32 %v238, 1e-08
        %v241 = vmul.f32 %v239, %v240
        %v242 = vrcp.pop %v241
        %v243 = vmul.f32 %v241, %v242
        %v244 = vsub.f32 1.0, %v243
        %v245 = vmul.f32 %v242, %v244
        %v246 = vadd.f32 %v242, %v245
        %vm247 = vweird.f32 %v241
        %vm248 = vweird.f32 %v242
        %vm249 = vmor %vm247, %vm248
        %v250 = vsel %vm249, %v242, %v246
        %v251 = vand.u32 2147483647, %v241
        %vm252 = vcmp.eq.f32.partialorder %v251, 8.507059e+37
        %v253 = vand.u32 %v241, 2147483648
        %v254 = vor.u32 1.1754944e-38, %v253
        %v255 = vsel %vm252, %v254, %v250
        %v256 = vmul.f32 %v206, %v255
        %vm257 = vcmask 7168
        %258 = vst.msk [vmem:[%s199] sm:$0xff] %vm257, %v256
        %p259 = scmp.lt.s32.totalorder %s19, 1
        %s260 = scalar_select %p259, %s19, 1
        %s261 = smul.addr %s260, 8
        %s262 = scalar_lea.vmem %s2, %s261
        // Predicated region
        $region37: #{tpu_custom_call.1} parent=27 // pred_check
          %p263 = pneg %p89
        $region38: #{tpu_custom_call.1} parent=27 // pred_check_branch
          %265 = sbr.rel (%p263) target = $region40
        $region39: #{tpu_custom_call.1} parent=27 // pred_region
          _
        $region40: #{tpu_custom_call.1} parent=27 // pred_fallthru
          _
      $region28: #{tpu_custom_call.1} parent=5 // pred_fallthru
        _
      %p266 = scmp.le.s32.totalorder 2, %s14
      // Predicated region
      $region41: #{tpu_custom_call.1} parent=5 // pred_check
        %p267 = pneg %p266
      $region42: #{tpu_custom_call.1} parent=5 // pred_check_branch
        %269 = sbr.rel (%p267) target = $region44
      $region43: #{tpu_custom_call.1} parent=5 // pred_region
        %s270 = ssub.s32 %s14, 2
        // Predicated region
        $region45: #{tpu_custom_call.1} parent=43 // pred_check
          %p271 = pneg %p95
        $region46: #{tpu_custom_call.1} parent=43 // pred_check_branch
          %273 = sbr.rel (%p271) target = $region48
        $region47: #{tpu_custom_call.1} parent=43 // pred_region
          %p274 = scmp.lt.s32.totalorder %s20, 1
          %s275 = scalar_select %p274, %s20, 1
          %s276 = smul.addr %s275, 8
          %s277 = scalar_lea.vmem %s2, %s276
        $region48: #{tpu_custom_call.1} parent=43 // pred_fallthru
          _
      $region44: #{tpu_custom_call.1} parent=5 // pred_fallthru
        _
    $region6: #{tpu_custom_call.1} parent=1 // loop_footer
      %s18 = sadd.s32 1, %s14
    $region7: #{tpu_custom_call.1} parent=1 // loop_footer_branch
      %13 = sbr.rel target = $region3
    $region8: #{tpu_custom_call.1} parent=1 // loop_exit
      _
    %278 = vsyncpa [#allocation3], 1
    %s279 = scalar_lea.sflag [#allocation3], 1
    %280 = vsyncpa %s279, 1
    %281 = vsyncpa [#allocation5], 1
    %s282 = scalar_lea.sflag [#allocation5], 1
    %283 = vsyncpa %s282, 1

</llo_original>
